<compile_context>
chip_gen: v6e
topology: v6e:2x2x1
jax: 0.10.0
libtpu: 0.0.40
codegen_flags: <defaults>
</compile_context>

<pallas_src>
import jax
import jax.numpy as jnp
from jax.experimental import pallas as pl
from jax.experimental.pallas import tpu as pltpu

FEAT = 133            # matches torch.nn.Linear(133, 133)
MAX_TB = 2048         # max batch-tile rows (VMEM-safe on v5e/v6e/v7x)
_MIN_ROWS_PER_TILE = 256  # below 2x this, a single tile is cheapest


def _round_up(n, m):
    return (n + m - 1) // m * m


def _choose_tile(B):
    """Pick a batch tile: one tile for small B, otherwise an even number of
    roughly equal tiles (balances v7x's two TensorCores), capped at MAX_TB."""
    if B <= 2 * _MIN_ROWS_PER_TILE:
        return _round_up(max(B, 8), 8)
    n_tiles = max(2, -(-B // MAX_TB))
    if n_tiles % 2:
        n_tiles += 1
    return _round_up(-(-B // n_tiles), 8)


def _mlp_kernel(x_ref, w1t_ref, b1_ref, w2t_ref, b2_ref, o_ref):
    # Hot path: two MXU matmuls + VPU bias adds, all f32, fully in VMEM.
    x = x_ref[...]
    h = jnp.dot(x, w1t_ref[...], preferred_element_type=jnp.float32) + b1_ref[...]
    y = jnp.dot(h, w2t_ref[...], preferred_element_type=jnp.float32) + b2_ref[...]
    o_ref[...] = y.astype(o_ref.dtype)


def prepare_params(w1, b1, w2, b2):
    """Transpose torch-layout (out, in) weights to (in, out) and reshape the
    biases to (1, FEAT).  Do this ONCE at parameter-load time."""
    w1t = jnp.asarray(w1, jnp.float32).T
    w2t = jnp.asarray(w2, jnp.float32).T
    b1r = jnp.asarray(b1, jnp.float32).reshape(1, FEAT)
    b2r = jnp.asarray(b2, jnp.float32).reshape(1, FEAT)
    return w1t, b1r, w2t, b2r


@jax.jit
def linear_labyrinth_forward(x, w1t, b1r, w2t, b2r):
    """x: (B, 133) f32.  Params from prepare_params().  Returns (B, 133)."""
    x = jnp.asarray(x, jnp.float32)
    B = x.shape[0]
    tb = _choose_tile(B)
    grid = (pl.cdiv(B, tb),)

    # Advisory cost hint so XLA overlaps this custom call with neighbors.
    flops = 2 * 2 * B * FEAT * FEAT
    bytes_accessed = 4 * (2 * B * FEAT + 2 * FEAT * FEAT + 2 * FEAT)

    return pl.pallas_call(
        _mlp_kernel,
        out_shape=jax.ShapeDtypeStruct((B, FEAT), jnp.float32),
        grid=grid,
        in_specs=[
            # x tiles stream with the grid (double-buffered by Pallas);
            # last dim 133 equals the full array dim, so the spec is legal.
            pl.BlockSpec((tb, FEAT), lambda i: (i, 0)),
            # Weights / biases: constant block index -> stay resident in VMEM.
            pl.BlockSpec((FEAT, FEAT), lambda i: (0, 0)),
            pl.BlockSpec((1, FEAT), lambda i: (0, 0)),
            pl.BlockSpec((FEAT, FEAT), lambda i: (0, 0)),
            pl.BlockSpec((1, FEAT), lambda i: (0, 0)),
        ],
        out_specs=pl.BlockSpec((tb, FEAT), lambda i: (i, 0)),
        compiler_params=pltpu.CompilerParams(
            dimension_semantics=("parallel",),   # batch tiles are independent
        ),
        cost_estimate=pl.CostEstimate(
            flops=flops, transcendentals=0, bytes_accessed=bytes_accessed),
    )(x, w1t, b1r, w2t, b2r)


def _reference(x, w1, b1, w2, b2):
    h = x @ w1.T + b1
    return h @ w2.T + b2


if __name__ == "__main__":
    key = jax.random.PRNGKey(0)
    kx, kw1, kb1, kw2, kb2, kx2 = jax.random.split(key, 6)

    bound = 1.0 / jnp.sqrt(jnp.float32(FEAT))  # torch.nn.Linear default init range
    w1 = jax.random.uniform(kw1, (FEAT, FEAT), jnp.float32, -bound, bound)
    b1 = jax.random.uniform(kb1, (FEAT,), jnp.float32, -bound, bound)
    w2 = jax.random.uniform(kw2, (FEAT, FEAT), jnp.float32, -bound, bound)
    b2 = jax.random.uniform(kb2, (FEAT,), jnp.float32, -bound, bound)

    # Prepare (transpose) weights once, outside the per-call path.
    w1t, b1r, w2t, b2r = prepare_params(w1, b1, w2, b2)

    # Small-batch case (single tile, batch not a multiple of 8 internally fine).
    B = 8
    x = jax.random.normal(kx, (B, FEAT), jnp.float32)
    out = jax.block_until_ready(linear_labyrinth_forward(x, w1t, b1r, w2t, b2r))
    ref = _reference(x, w1, b1, w2, b2)
    assert out.shape == (B, FEAT)
    assert jnp.allclose(out, ref, atol=1e-4, rtol=1e-4), "mismatch (B=8)"

    # Multi-tile case exercising the cdiv grid + ragged last tile
    # (B=600 -> two balanced 304-row tiles, second one partial).
    B2 = 600
    x2 = jax.random.normal(kx2, (B2, FEAT), jnp.float32)
    out2 = jax.block_until_ready(linear_labyrinth_forward(x2, w1t, b1r, w2t, b2r))
    ref2 = _reference(x2, w1, b1, w2, b2)
    assert out2.shape == (B2, FEAT)
    assert jnp.allclose(out2, ref2, atol=1e-4, rtol=1e-4), "mismatch (B=600)"

    print("KERNEL_OK")
</pallas_src>

<mosaic_0001>
module attributes {stable_mosaic.version = 11 : i64} {
  func.func @_mlp_kernel(%arg0: i32, %arg1: memref<8x133xf32, #tpu.memory_space<vmem>>, %arg2: memref<133x133xf32, #tpu.memory_space<vmem>>, %arg3: memref<1x133xf32, #tpu.memory_space<vmem>>, %arg4: memref<133x133xf32, #tpu.memory_space<vmem>>, %arg5: memref<1x133xf32, #tpu.memory_space<vmem>>, %arg6: memref<8x133xf32, #tpu.memory_space<vmem>>) attributes {dimension_semantics = [#tpu.dimension_semantics<parallel>], iteration_bounds = array<i64: 1>, scalar_prefetch = 0 : i64, scratch_operands = 0 : i64, tpu.core_type = #tpu.core_type<tc>, window_params = [{transform_indices = @transform_0, window_bounds = array<i64: 8, 133>}, {pipeline_mode = #tpu.pipeline_mode<synchronous>, transform_indices = @transform_1, window_bounds = array<i64: 133, 133>}, {pipeline_mode = #tpu.pipeline_mode<synchronous>, transform_indices = @transform_2, window_bounds = array<i64: 1, 133>}, {pipeline_mode = #tpu.pipeline_mode<synchronous>, transform_indices = @transform_3, window_bounds = array<i64: 133, 133>}, {pipeline_mode = #tpu.pipeline_mode<synchronous>, transform_indices = @transform_4, window_bounds = array<i64: 1, 133>}, {transform_indices = @transform_5, window_bounds = array<i64: 8, 133>}]} {
    %c0 = arith.constant 0 : index
    %c0_0 = arith.constant 0 : index
    %0 = vector.load %arg1[%c0, %c0_0] : memref<8x133xf32, #tpu.memory_space<vmem>>, vector<8x133xf32>
    %c0_1 = arith.constant 0 : index
    %c0_2 = arith.constant 0 : index
    %1 = vector.load %arg2[%c0_1, %c0_2] : memref<133x133xf32, #tpu.memory_space<vmem>>, vector<133x133xf32>
    %cst = arith.constant dense<0.000000e+00> : vector<8x133xf32>
    %2 = tpu.matmul %0, %1, %cst {dimension_numbers = #tpu.dot_dimension_numbers<[1], [0], [0], [1], [0, 0, 1, 1], [], []>} : vector<8x133xf32>, vector<133x133xf32>, vector<8x133xf32> -> vector<8x133xf32>
    %c0_3 = arith.constant 0 : index
    %c0_4 = arith.constant 0 : index
    %3 = vector.load %arg3[%c0_3, %c0_4] : memref<1x133xf32, #tpu.memory_space<vmem>>, vector<1x133xf32>
    %4 = vector.broadcast %3 : vector<1x133xf32> to vector<8x133xf32>
    %5 = arith.addf %2, %4 : vector<8x133xf32>
    %c0_5 = arith.constant 0 : index
    %c0_6 = arith.constant 0 : index
    %6 = vector.load %arg4[%c0_5, %c0_6] : memref<133x133xf32, #tpu.memory_space<vmem>>, vector<133x133xf32>
    %cst_7 = arith.constant dense<0.000000e+00> : vector<8x133xf32>
    %7 = tpu.matmul %5, %6, %cst_7 {dimension_numbers = #tpu.dot_dimension_numbers<[1], [0], [0], [1], [0, 0, 1, 1], [], []>} : vector<8x133xf32>, vector<133x133xf32>, vector<8x133xf32> -> vector<8x133xf32>
    %c0_8 = arith.constant 0 : index
    %c0_9 = arith.constant 0 : index
    %8 = vector.load %arg5[%c0_8, %c0_9] : memref<1x133xf32, #tpu.memory_space<vmem>>, vector<1x133xf32>
    %9 = vector.broadcast %8 : vector<1x133xf32> to vector<8x133xf32>
    %10 = arith.addf %7, %9 : vector<8x133xf32>
    %c0_10 = arith.constant 0 : index
    %c0_11 = arith.constant 0 : index
    %11 = vector.load %arg6[%c0_10, %c0_11] : memref<8x133xf32, #tpu.memory_space<vmem>>, vector<8x133xf32>
    tpu.vector_store %arg6[%c0_10, %c0_11], %10 {strides = array<i32>} : memref<8x133xf32, #tpu.memory_space<vmem>>, vector<8x133xf32>,
    return
  }
  func.func @transform_0(%arg0: i32) -> (i32, i32) {
    %c0_i32 = arith.constant 0 : i32
    %c0_i32_0 = arith.constant 0 : i32
    return %arg0, %c0_i32 : i32, i32
  }
  func.func @transform_1(%arg0: i32) -> (i32, i32) {
    %c0_i32 = arith.constant 0 : i32
    %c0_i32_0 = arith.constant 0 : i32
    %c0_i32_1 = arith.constant 0 : i32
    return %c0_i32, %c0_i32_0 : i32, i32
  }
  func.func @transform_2(%arg0: i32) -> (i32, i32) {
    %c0_i32 = arith.constant 0 : i32
    %c0_i32_0 = arith.constant 0 : i32
    %c0_i32_1 = arith.constant 0 : i32
    return %c0_i32, %c0_i32_0 : i32, i32
  }
  func.func @transform_3(%arg0: i32) -> (i32, i32) {
    %c0_i32 = arith.constant 0 : i32
    %c0_i32_0 = arith.constant 0 : i32
    %c0_i32_1 = arith.constant 0 : i32
    return %c0_i32, %c0_i32_0 : i32, i32
  }
  func.func @transform_4(%arg0: i32) -> (i32, i32) {
    %c0_i32 = arith.constant 0 : i32
    %c0_i32_0 = arith.constant 0 : i32
    %c0_i32_1 = arith.constant 0 : i32
    return %c0_i32, %c0_i32_0 : i32, i32
  }
  func.func @transform_5(%arg0: i32) -> (i32, i32) {
    %c0_i32 = arith.constant 0 : i32
    %c0_i32_0 = arith.constant 0 : i32
    return %arg0, %c0_i32 : i32, i32
  }
}

</mosaic_0001>

<llo_original>
// kernel: linear_labyrinth_forward.1
$region0: #{linear_labyrinth_forward.1}
  #allocation0 [shape = 'u32[]', space=smem, size = 0x4, offset = 0x4, fixed_abs, tag = 'smem constant byte address 0x4 - core index']
  #allocation1 [shape = 'u32[144,128]{1,0:T(1,128)}', space=vmem, size = 0x12000, scoped, tag = 'internal scratch']
  %s0 = inlined_call_operand.hbm [shape: f32[8,133], index: 0, kind: input, shape index: {}]
  %s1 = inlined_call_operand.hbm [shape: f32[133,133], index: 1, kind: input, shape index: {}]
  %s2 = inlined_call_operand.vmem [shape: f32[1,133], index: 2, kind: input, shape index: {}]
  %s3 = inlined_call_operand.hbm [shape: f32[133,133], index: 3, kind: input, shape index: {}]
  %s4 = inlined_call_operand.vmem [shape: f32[1,133], index: 4, kind: input, shape index: {}]
  %s5 = inlined_call_operand.hbm [shape: f32[8,133], index: 5, kind: output, shape index: {}]
  %s6 = sld [smem:[#allocation0]]
  $region42: #{linear_labyrinth_forward.1} parent=0
    _
  %s8 = ssub.s32 1, %s6
  %s9 = scalar_select 0, %s8, %s6
  $region1: #{linear_labyrinth_forward.1} parent=0
    #allocation2 [shape = 'u8[8192]{0}', space=vmem, size = 0x2000, scoped, tag = 'input window, operand 0, single buffered']
    #allocation3 [shape = 's32[1]{0}', space=sflag, size = 0x4, scoped, tag = 'scoped memory for linear_labyrinth_forward.1']
    #allocation4 [shape = 's32[1]{0}', space=sflag, size = 0x4, scoped, tag = 'scoped memory for linear_labyrinth_forward.1']
    #allocation5 [shape = 'u8[139264]{0}', space=vmem, size = 0x22000, scoped, tag = 'input window, operand 1, single buffered']
    #allocation6 [shape = 's32[1]{0}', space=sflag, size = 0x4, scoped, tag = 'scoped memory for linear_labyrinth_forward.1']
    #allocation7 [shape = 'u8[139264]{0}', space=vmem, size = 0x22000, scoped, tag = 'input window, operand 3, single buffered']
    #allocation8 [shape = 'u8[8192]{0}', space=vmem, size = 0x2000, scoped, tag = 'output window, operand 0, single buffered']
    %10 = vsyncpa [#allocation3], 0
    %11 = vsyncpa [#allocation6], 0
    %12 = vsyncpa [#allocation4], 0
    // Predicated region
    $region2: #{linear_labyrinth_forward.1} parent=1 // pred_check
      _
    $region3: #{linear_labyrinth_forward.1} parent=1 // pred_check_branch
      %14 = sbr.rel (0) target = $region5
    $region4: #{linear_labyrinth_forward.1} parent=1 // pred_region
      %s16 = ssub.s32 256, 256
      %17 = vsyncadd [#allocation3], %s16
      %s19 = sshll.u32 [#allocation2], 4
      %s20 = int_to_ptr.vmem [resolvable:$true] %s19
      %22 = dma.hbm_to_vmem [thread:$0]  %s0, 256, %s20, [#allocation3]
    $region5: #{linear_labyrinth_forward.1} parent=1 // pred_fallthru
      _
    // Predicated region
    $region6: #{linear_labyrinth_forward.1} parent=1 // pred_check
      _
    $region7: #{linear_labyrinth_forward.1} parent=1 // pred_check_branch
      %24 = sbr.rel (0) target = $region9
    $region8: #{linear_labyrinth_forward.1} parent=1 // pred_region
      %s26 = ssub.s32 4352, 4352
      %27 = vsyncadd [#allocation6], %s26
      %s28 = sshll.u32 [#allocation5], 4
      %s29 = int_to_ptr.vmem [resolvable:$true] %s28
      %34 = dma.hbm_to_vmem [thread:$0]  %s1, 4352, %s29, [#allocation6], 256, 256, 16
    $region9: #{linear_labyrinth_forward.1} parent=1 // pred_fallthru
      _
    // Predicated region
    $region10: #{linear_labyrinth_forward.1} parent=1 // pred_check
      _
    $region11: #{linear_labyrinth_forward.1} parent=1 // pred_check_branch
      %36 = sbr.rel (0) target = $region13
    $region12: #{linear_labyrinth_forward.1} parent=1 // pred_region
      _
    $region13: #{linear_labyrinth_forward.1} parent=1 // pred_fallthru
      _
    // Predicated region
    $region14: #{linear_labyrinth_forward.1} parent=1 // pred_check
      _
    $region15: #{linear_labyrinth_forward.1} parent=1 // pred_check_branch
      %38 = sbr.rel (0) target = $region17
    $region16: #{linear_labyrinth_forward.1} parent=1 // pred_region
      %s40 = ssub.s32 4352, 4352
      %41 = vsyncadd [#allocation6], %s40
      %s42 = sshll.u32 [#allocation7], 4
      %s43 = int_to_ptr.vmem [resolvable:$true] %s42
      %48 = dma.hbm_to_vmem [thread:$0]  %s3, 4352, %s43, [#allocation6], 256, 256, 16
    $region17: #{linear_labyrinth_forward.1} parent=1 // pred_fallthru
      _
    // Predicated region
    $region18: #{linear_labyrinth_forward.1} parent=1 // pred_check
      _
    $region19: #{linear_labyrinth_forward.1} parent=1 // pred_check_branch
      %50 = sbr.rel (0) target = $region21
    $region20: #{linear_labyrinth_forward.1} parent=1 // pred_region
      _
    $region21: #{linear_labyrinth_forward.1} parent=1 // pred_fallthru
      _
    // Predicated region
    $region22: #{linear_labyrinth_forward.1} parent=1 // pred_check
      _
    $region23: #{linear_labyrinth_forward.1} parent=1 // pred_check_branch
      %52 = sbr.rel (0) target = $region25
    $region24: #{linear_labyrinth_forward.1} parent=1 // pred_region
      %53 = dma.done [#allocation3], 256
    $region25: #{linear_labyrinth_forward.1} parent=1 // pred_fallthru
      _
    // Predicated region
    $region26: #{linear_labyrinth_forward.1} parent=1 // pred_check
      _
    $region27: #{linear_labyrinth_forward.1} parent=1 // pred_check_branch
      %55 = sbr.rel (0) target = $region29
    $region28: #{linear_labyrinth_forward.1} parent=1 // pred_region
      %56 = dma.done [#allocation6], 4352
    $region29: #{linear_labyrinth_forward.1} parent=1 // pred_fallthru
      _
    // Predicated region
    $region30: #{linear_labyrinth_forward.1} parent=1 // pred_check
      _
    $region31: #{linear_labyrinth_forward.1} parent=1 // pred_check_branch
      %58 = sbr.rel (0) target = $region33
    $region32: #{linear_labyrinth_forward.1} parent=1 // pred_region
      %59 = dma.done [#allocation6], 4352
    $region33: #{linear_labyrinth_forward.1} parent=1 // pred_fallthru
      _
    %v60 = vld [vmem:[#allocation2] sm:$0xff]
    %v61 = vld [vmem:[#allocation2 + $0x8] sm:$0xff]
    %v62 = vld [vmem:[#allocation5] sm:$0xff]
    %v63 = vld [vmem:[#allocation5 + $0x8] sm:$0xff]
    %v64 = vld [vmem:[#allocation5 + $0x10] sm:$0xff]
    %v65 = vld [vmem:[#allocation5 + $0x18] sm:$0xff]
    %v66 = vld [vmem:[#allocation5 + $0x20] sm:$0xff]
    %v67 = vld [vmem:[#allocation5 + $0x28] sm:$0xff]
    %v68 = vld [vmem:[#allocation5 + $0x30] sm:$0xff]
    %v69 = vld [vmem:[#allocation5 + $0x38] sm:$0xff]
    %v70 = vld [vmem:[#allocation5 + $0x40] sm:$0xff]
    %v71 = vld [vmem:[#allocation5 + $0x48] sm:$0xff]
    %v72 = vld [vmem:[#allocation5 + $0x50] sm:$0xff]
    %v73 = vld [vmem:[#allocation5 + $0x58] sm:$0xff]
    %v74 = vld [vmem:[#allocation5 + $0x60] sm:$0xff]
    %v75 = vld [vmem:[#allocation5 + $0x68] sm:$0xff]
    %v76 = vld [vmem:[#allocation5 + $0x70] sm:$0xff]
    %v77 = vld [vmem:[#allocation5 + $0x78] sm:$0xff]
    %v78 = vld [vmem:[#allocation5 + $0x80] sm:$0xff]
    %v79 = vld [vmem:[#allocation5 + $0x88] sm:$0xff]
    %v80 = vld [vmem:[#allocation5 + $0x90] sm:$0xff]
    %v81 = vld [vmem:[#allocation5 + $0x98] sm:$0xff]
    %v82 = vld [vmem:[#allocation5 + $0xa0] sm:$0xff]
    %v83 = vld [vmem:[#allocation5 + $0xa8] sm:$0xff]
    %v84 = vld [vmem:[#allocation5 + $0xb0] sm:$0xff]
    %v85 = vld [vmem:[#allocation5 + $0xb8] sm:$0xff]
    %v86 = vld [vmem:[#allocation5 + $0xc0] sm:$0xff]
    %v87 = vld [vmem:[#allocation5 + $0xc8] sm:$0xff]
    %v88 = vld [vmem:[#allocation5 + $0xd0] sm:$0xff]
    %v89 = vld [vmem:[#allocation5 + $0xd8] sm:$0xff]
    %v90 = vld [vmem:[#allocation5 + $0xe0] sm:$0xff]
    %v91 = vld [vmem:[#allocation5 + $0xe8] sm:$0xff]
    %v92 = vld [vmem:[#allocation5 + $0xf0] sm:$0xff]
    %v93 = vld [vmem:[#allocation5 + $0xf8] sm:$0xff]
    %v94 = vld [vmem:[#allocation5 + $0x100] sm:$0x1f]
    %v95 = vld [vmem:[#allocation5 + $0x108] sm:$0x1f]
    %v96 = vld [vmem:[%s2] sm:$0x3]
    %v98 = vlaneseq
    %v99 = vshrl.u32 %v98, 7
    %v100 = vsub.s32 0, %v99
    %v101 = vrot.slane %v96, %v100
    %v102 = vlaneseq
    %v103 = vshrl.u32 %v102, 7
    %v104 = vsub.s32 1, %v103
    %v105 = vrot.slane %v96, %v104
    %vm108 = vcmask 39936
    %v110 = vsel %vm108, %v61, 0
    %vm112 = vcmask 1044480
    %v114 = vsel %vm112, %v94, 0
    %v117 = vsel %vm112, %v95, 0
    %119 = vmatprep.subr.mxu0 %v93
    %120 = vmatpush1.msra.mxu0 %v92
    %121 = vmatprep.subr.mxu0 %v91
    %122 = vmatpush1.msra.mxu0 %v90
    %123 = vmatprep.subr.mxu0 %v89
    %124 = vmatpush1.msra.mxu0 %v88
    %125 = vmatprep.subr.mxu0 %v87
    %126 = vmatpush1.msra.mxu0 %v86
    %127 = vmatprep.subr.mxu0 %v85
    %128 = vmatpush1.msra.mxu0 %v84
    %129 = vmatprep.subr.mxu0 %v83
    %130 = vmatpush1.msra.mxu0 %v82
    %131 = vmatprep.subr.mxu0 %v81
    %132 = vmatpush1.msra.mxu0 %v80
    %133 = vmatprep.subr.mxu0 %v79
    %134 = vmatpush1.msra.mxu0 %v78
    %135 = vmatprep.subr.mxu0 %v77
    %136 = vmatpush1.msra.mxu0 %v76
    %137 = vmatprep.subr.mxu0 %v75
    %138 = vmatpush1.msra.mxu0 %v74
    %139 = vmatprep.subr.mxu0 %v73
    %140 = vmatpush1.msra.mxu0 %v72
    %141 = vmatprep.subr.mxu0 %v71
    %142 = vmatpush1.msra.mxu0 %v70
    %143 = vmatprep.subr.mxu0 %v69
    %144 = vmatpush1.msra.mxu0 %v68
    %145 = vmatprep.subr.mxu0 %v67
    %146 = vmatpush1.msra.mxu0 %v66
    %147 = vmatprep.subr.mxu0 %v65
    %148 = vmatpush1.msra.mxu0 %v64
    %149 = vmatprep.subr.mxu0 %v63
    %150 = vmatpush1.msra.mxu0 %v62
    %151 = vmatprep.subr.mxu0 0.0
    %152 = vmatpush2.msra.mxu0 0.0
    %153 = vmatprep.subr.mxu0 0.0
    %154 = vmatpush2.msra.mxu0 0.0
    %155 = vmatprep.subr.mxu0 0.0
    %156 = vmatpush2.msra.mxu0 0.0
    %157 = vmatprep.subr.mxu0 0.0
    %158 = vmatpush2.msra.mxu0 0.0
    %159 = vmatprep.subr.mxu0 0.0
    %160 = vmatpush2.msra.mxu0 0.0
    %161 = vmatprep.subr.mxu0 0.0
    %162 = vmatpush2.msra.mxu0 0.0
    %163 = vmatprep.subr.mxu0 0.0
    %164 = vmatpush2.msra.mxu0 0.0
    %165 = vmatprep.subr.mxu0 0.0
    %166 = vmatpush2.msra.mxu0 0.0
    %167 = vmatprep.subr.mxu0 0.0
    %168 = vmatpush2.msra.mxu0 0.0
    %169 = vmatprep.subr.mxu0 0.0
    %170 = vmatpush2.msra.mxu0 0.0
    %171 = vmatprep.subr.mxu0 0.0
    %172 = vmatpush2.msra.mxu0 0.0
    %173 = vmatprep.subr.mxu0 0.0
    %174 = vmatpush2.msra.mxu0 0.0
    %175 = vmatprep.subr.mxu0 0.0
    %176 = vmatpush2.msra.mxu0 0.0
    %177 = vmatprep.subr.mxu0 0.0
    %178 = vmatpush2.msra.mxu0 0.0
    %179 = vmatprep.subr.mxu0 0.0
    %180 = vmatpush2.msra.mxu0 0.0
    %181 = vmatprep.subr.mxu0 %v117
    %182 = vmatpush2.msra.mxu0 %v114
    %183 = vmatprep.mubr.f32.mxu0 %v110
    %184 = vmatmul.mubr.f32.gmra.mxu0 %v60
    %v185 = vpop.f32.mrf.mxu0
    %v186 = vadd.f32 %v101, %v185
    %v187 = vpop.f32.mrf.mxu0
    %v188 = vadd.f32 %v105, %v187
    %189 = vdwg.mxu0
    %v190 = vld [vmem:[#allocation7] sm:$0xff]
    %v191 = vld [vmem:[#allocation7 + $0x8] sm:$0xff]
    %v192 = vld [vmem:[#allocation7 + $0x10] sm:$0xff]
    %v193 = vld [vmem:[#allocation7 + $0x18] sm:$0xff]
    %v194 = vld [vmem:[#allocation7 + $0x20] sm:$0xff]
    %v195 = vld [vmem:[#allocation7 + $0x28] sm:$0xff]
    %v196 = vld [vmem:[#allocation7 + $0x30] sm:$0xff]
    %v197 = vld [vmem:[#allocation7 + $0x38] sm:$0xff]
    %v198 = vld [vmem:[#allocation7 + $0x40] sm:$0xff]
    %v199 = vld [vmem:[#allocation7 + $0x48] sm:$0xff]
    %v200 = vld [vmem:[#allocation7 + $0x50] sm:$0xff]
    %v201 = vld [vmem:[#allocation7 + $0x58] sm:$0xff]
    %v202 = vld [vmem:[#allocation7 + $0x60] sm:$0xff]
    %v203 = vld [vmem:[#allocation7 + $0x68] sm:$0xff]
    %v204 = vld [vmem:[#allocation7 + $0x70] sm:$0xff]
    %v205 = vld [vmem:[#allocation7 + $0x78] sm:$0xff]
    %v206 = vld [vmem:[#allocation7 + $0x80] sm:$0xff]
    %v207 = vld [vmem:[#allocation7 + $0x88] sm:$0xff]
    %v208 = vld [vmem:[#allocation7 + $0x90] sm:$0xff]
    %v209 = vld [vmem:[#allocation7 + $0x98] sm:$0xff]
    %v210 = vld [vmem:[#allocation7 + $0xa0] sm:$0xff]
    %v211 = vld [vmem:[#allocation7 + $0xa8] sm:$0xff]
    %v212 = vld [vmem:[#allocation7 + $0xb0] sm:$0xff]
    %v213 = vld [vmem:[#allocation7 + $0xb8] sm:$0xff]
    %v214 = vld [vmem:[#allocation7 + $0xc0] sm:$0xff]
    %v215 = vld [vmem:[#allocation7 + $0xc8] sm:$0xff]
    %v216 = vld [vmem:[#allocation7 + $0xd0] sm:$0xff]
    %v217 = vld [vmem:[#allocation7 + $0xd8] sm:$0xff]
    %v218 = vld [vmem:[#allocation7 + $0xe0] sm:$0xff]
    %v219 = vld [vmem:[#allocation7 + $0xe8] sm:$0xff]
    %v220 = vld [vmem:[#allocation7 + $0xf0] sm:$0xff]
    %v221 = vld [vmem:[#allocation7 + $0xf8] sm:$0xff]
    %v222 = vld [vmem:[#allocation7 + $0x100] sm:$0x1f]
    %v223 = vld [vmem:[#allocation7 + $0x108] sm:$0x1f]
    %v224 = vld [vmem:[%s4] sm:$0x3]
    %v226 = vlaneseq
    %v227 = vshrl.u32 %v226, 7
    %v228 = vsub.s32 0, %v227
    %v229 = vrot.slane %v224, %v228
    %v230 = vlaneseq
    %v231 = vshrl.u32 %v230, 7
    %v232 = vsub.s32 1, %v231
    %v233 = vrot.slane %v224, %v232
    %v237 = vsel %vm108, %v188, 0
    %v240 = vsel %vm112, %v222, 0
    %v243 = vsel %vm112, %v223, 0
    %245 = vmatprep.subr.mxu0 %v221
    %246 = vmatpush1.msra.mxu0 %v220
    %247 = vmatprep.subr.mxu0 %v219
    %248 = vmatpush1.msra.mxu0 %v218
    %249 = vmatprep.subr.mxu0 %v217
    %250 = vmatpush1.msra.mxu0 %v216
    %251 = vmatprep.subr.mxu0 %v215
    %252 = vmatpush1.msra.mxu0 %v214
    %253 = vmatprep.subr.mxu0 %v213
    %254 = vmatpush1.msra.mxu0 %v212
    %255 = vmatprep.subr.mxu0 %v211
    %256 = vmatpush1.msra.mxu0 %v210
    %257 = vmatprep.subr.mxu0 %v209
    %258 = vmatpush1.msra.mxu0 %v208
    %259 = vmatprep.subr.mxu0 %v207
    %260 = vmatpush1.msra.mxu0 %v206
    %261 = vmatprep.subr.mxu0 %v205
    %262 = vmatpush1.msra.mxu0 %v204
    %263 = vmatprep.subr.mxu0 %v203
    %264 = vmatpush1.msra.mxu0 %v202
    %265 = vmatprep.subr.mxu0 %v201
    %266 = vmatpush1.msra.mxu0 %v200
    %267 = vmatprep.subr.mxu0 %v199
    %268 = vmatpush1.msra.mxu0 %v198
    %269 = vmatprep.subr.mxu0 %v197
    %270 = vmatpush1.msra.mxu0 %v196
    %271 = vmatprep.subr.mxu0 %v195
    %272 = vmatpush1.msra.mxu0 %v194
    %273 = vmatprep.subr.mxu0 %v193
    %274 = vmatpush1.msra.mxu0 %v192
    %275 = vmatprep.subr.mxu0 %v191
    %276 = vmatpush1.msra.mxu0 %v190
    %277 = vmatprep.subr.mxu0 0.0
    %278 = vmatpush2.msra.mxu0 0.0
    %279 = vmatprep.subr.mxu0 0.0
    %280 = vmatpush2.msra.mxu0 0.0
    %281 = vmatprep.subr.mxu0 0.0
    %282 = vmatpush2.msra.mxu0 0.0
    %283 = vmatprep.subr.mxu0 0.0
    %284 = vmatpush2.msra.mxu0 0.0
    %285 = vmatprep.subr.mxu0 0.0
    %286 = vmatpush2.msra.mxu0 0.0
    %287 = vmatprep.subr.mxu0 0.0
    %288 = vmatpush2.msra.mxu0 0.0
    %289 = vmatprep.subr.mxu0 0.0
    %290 = vmatpush2.msra.mxu0 0.0
    %291 = vmatprep.subr.mxu0 0.0
    %292 = vmatpush2.msra.mxu0 0.0
    %293 = vmatprep.subr.mxu0 0.0
    %294 = vmatpush2.msra.mxu0 0.0
    %295 = vmatprep.subr.mxu0 0.0
    %296 = vmatpush2.msra.mxu0 0.0
    %297 = vmatprep.subr.mxu0 0.0
    %298 = vmatpush2.msra.mxu0 0.0
    %299 = vmatprep.subr.mxu0 0.0
    %300 = vmatpush2.msra.mxu0 0.0
    %301 = vmatprep.subr.mxu0 0.0
    %302 = vmatpush2.msra.mxu0 0.0
    %303 = vmatprep.subr.mxu0 0.0
    %304 = vmatpush2.msra.mxu0 0.0
    %305 = vmatprep.subr.mxu0 0.0
    %306 = vmatpush2.msra.mxu0 0.0
    %307 = vmatprep.subr.mxu0 %v243
    %308 = vmatpush2.msra.mxu0 %v240
    %309 = vmatprep.mubr.f32.mxu0 %v237
    %310 = vmatmul.mubr.f32.gmra.mxu0 %v186
    %v311 = vpop.f32.mrf.mxu0
    %v312 = vadd.f32 %v229, %v311
    %v313 = vpop.f32.mrf.mxu0
    %v314 = vadd.f32 %v233, %v313
    %315 = vdwg.mxu0
    %316 = vst [vmem:[#allocation8] sm:$0xff] %v312
    %317 = vst.msk [vmem:[#allocation8 + $0x8] sm:$0xff] %vm108, %v314
    // Predicated region
    $region34: #{linear_labyrinth_forward.1} parent=1 // pred_check
      _
    $region35: #{linear_labyrinth_forward.1} parent=1 // pred_check_branch
      %319 = sbr.rel (0) target = $region37
    $region36: #{linear_labyrinth_forward.1} parent=1 // pred_region
      %s321 = ssub.s32 256, 256
      %322 = vsyncadd [#allocation4], %s321
      %s324 = sshll.u32 [#allocation8], 4
      %s325 = int_to_ptr.vmem [resolvable:$true] %s324
      %327 = dma.vmem_to_hbm [thread:$0]  %s325, 256, %s5, [#allocation4]
    $region37: #{linear_labyrinth_forward.1} parent=1 // pred_fallthru
      _
    // Predicated region
    $region38: #{linear_labyrinth_forward.1} parent=1 // pred_check
      _
    $region39: #{linear_labyrinth_forward.1} parent=1 // pred_check_branch
      %329 = sbr.rel (0) target = $region41
    $region40: #{linear_labyrinth_forward.1} parent=1 // pred_region
      %330 = dma.done [#allocation4], 256
    $region41: #{linear_labyrinth_forward.1} parent=1 // pred_fallthru
      _
    %331 = vsyncpa [#allocation3], 1
    %332 = vsyncpa [#allocation6], 1
    %333 = vsyncpa [#allocation4], 1

</llo_original>
